<compile_context>
chip_gen: v7x
topology: tpu7x:2x2x1
jax: 0.10.0
libtpu: 0.0.40
codegen_flags: <defaults>
</compile_context>

<pallas_src>
import numpy as np
import jax
import jax.numpy as jnp
from jax.experimental import pallas as pl
from jax.experimental.pallas import tpu as pltpu

IMAGENET_MEAN = (0.485, 0.456, 0.406)
IMAGENET_STD = (0.229, 0.224, 0.225)
RESIZE_SHORT = 400
RESIZE_MAX = 1333
QMIN, QMAX = 0.0, 255.0
BAND_H = 32                      # stage-2 output row band (multiple of 8)


def _round_up(a, b):
    return ((a + b - 1) // b) * b


def _vmem_limit_bytes():
    # ~96 MiB on 128 MiB parts (v5e/v6e), ~48 MiB on v7x's 64 MiB VMEM.
    try:
        cap = int(pltpu.get_tpu_info().vmem_capacity_bytes)
    except Exception:
        cap = 128 * 1024 * 1024
    return max(32 * 1024 * 1024, min(cap * 3 // 4, 112 * 1024 * 1024))


def _compute_resized_size(h, w, size=RESIZE_SHORT, max_size=RESIZE_MAX):
    short, long = (h, w) if h <= w else (w, h)
    new_short = size
    new_long = int(size * long / short)
    if new_long > max_size:
        new_short = int(max_size * new_short / new_long)
        new_long = max_size
    return (new_short, new_long) if h <= w else (new_long, new_short)


def _bilinear_matrix(out_size, in_size):
    # align_corners=False bilinear weights (tensor path, antialias=False).
    # TODO(synk): torchvision antialias='warn' may antialias large downscales in
    # newer releases; only the antialias=False path is modeled.
    scale = in_size / out_size
    i = np.arange(out_size)
    src = np.maximum((i + 0.5) * scale - 0.5, 0.0)
    i0 = np.minimum(np.floor(src).astype(np.int64), in_size - 1)
    i1 = np.minimum(i0 + 1, in_size - 1)
    lam = (src - i0).astype(np.float32)
    m = np.zeros((out_size, in_size), dtype=np.float32)
    m[i, i0] += (1.0 - lam)
    m[i, i1] += lam
    return m


# --------------------------------------------------------------------------
# pltpu.roll convention probe (portability guard: one tiny kernel, cached).
# --------------------------------------------------------------------------
_ROLL_LIKE_NP = None


def _roll_like_np():
    """True iff pltpu.roll(x, s, axis)[..., i] == x[..., i - s] (np.roll)."""
    global _ROLL_LIKE_NP
    if _ROLL_LIKE_NP is None:
        def probe(x_ref, o_ref):
            o_ref[...] = pltpu.roll(x_ref[...], 1, axis=1)

        x = jnp.broadcast_to(jax.lax.iota(jnp.float32, 128), (8, 128))
        y = pl.pallas_call(
            probe, out_shape=jax.ShapeDtypeStruct((8, 128), jnp.float32))(x)
        _ROLL_LIKE_NP = bool(jax.device_get(y[0, 1]) == 0.0)
    return _ROLL_LIKE_NP


# --------------------------------------------------------------------------
# Stage 1: mean-subtract + bilinear resize (bf16 MXU), halo + lane padding
# baked into the interp matrices, input W tiled as a reduction axis.
# --------------------------------------------------------------------------
def _make_resize_kernel(w_actual, wk, need_mask):
    def kernel(mean_ref, x_ref, rwt_ref, rh_ref, o_ref, acc_ref):
        c = pl.program_id(0)
        k = pl.program_id(2)

        @pl.when(k == 0)
        def _():
            acc_ref[...] = jnp.zeros_like(acc_ref)

        xm = x_ref[0] - mean_ref[c]                     # (H, wk) f32
        if need_mask:                                   # ragged last W-chunk
            col = k * wk + jax.lax.broadcasted_iota(jnp.int32, xm.shape, 1)
            xm = jnp.where(col < w_actual, xm, 0.0)
        acc_ref[...] += jnp.dot(xm.astype(jnp.bfloat16), rwt_ref[...],
                                preferred_element_type=jnp.float32)

        @pl.when(k == pl.num_programs(2) - 1)
        def _():
            o_ref[0] = jnp.dot(rh_ref[...], acc_ref[...].astype(jnp.bfloat16),
                               preferred_element_type=jnp.float32)

    return kernel


# --------------------------------------------------------------------------
# Stage 2a: 3x3 conv over 32-row bands + fused per-band min/max.
# --------------------------------------------------------------------------
def _make_conv_kernel(cin, cout, band_h, ho, wo, wp_pad, lane_shift):
    def kernel(w_ref, b_ref, x_ref, feat_ref, mn_ref, mx_ref):
        i = pl.program_id(0)
        row0 = pl.multiple_of(i * band_h, 8)

        # 27 taps: lane (kw) shifts via roll (XLU), kh via in-band row slices.
        taps = []
        for c in range(cin):
            xc = x_ref[c, pl.ds(row0, band_h + 2), :]          # (band_h+2, Wp)
            shifted = [xc,
                       pltpu.roll(xc, lane_shift(1), axis=1),
                       pltpu.roll(xc, lane_shift(2), axis=1)]
            for kh in range(3):
                for kw in range(3):
                    taps.append(shifted[kw][kh:kh + band_h, :])

        rows = row0 + jax.lax.broadcasted_iota(jnp.int32, (band_h, wp_pad), 0)
        cols = jax.lax.broadcasted_iota(jnp.int32, (band_h, wp_pad), 1)
        valid = (rows < ho) & (cols < wo)
        big = jnp.float32(3.0e38)

        bmn = None
        bmx = None
        for o in range(cout):
            acc = taps[0] * w_ref[o, 0]
            for t in range(1, cin * 9):
                acc = acc + taps[t] * w_ref[o, t]
            acc = acc + b_ref[o]
            feat_ref[o] = acc
            omn = jnp.min(jnp.where(valid, acc, big), keepdims=True)
            omx = jnp.max(jnp.where(valid, acc, -big), keepdims=True)
            bmn = omn if bmn is None else jnp.minimum(bmn, omn)
            bmx = omx if bmx is None else jnp.maximum(bmx, omx)
        mn_ref[0] = jnp.broadcast_to(bmn, (8, 128))
        mx_ref[0] = jnp.broadcast_to(bmx, (8, 128))

    return kernel


# --------------------------------------------------------------------------
# Stage 2b: affine quantize, float32 output (integer levels), unpadded shape.
# --------------------------------------------------------------------------
def _make_quant_kernel(wo):
    def kernel(qp_ref, f_ref, q_ref):
        inv_s = qp_ref[0]
        zp = qp_ref[1]
        vals = f_ref[:, :, :wo] * inv_s + zp
        q_ref[...] = jnp.round(jnp.clip(vals, QMIN, QMAX))

    return kernel


# --------------------------------------------------------------------------
# Full ClientModel.forward equivalent.
# --------------------------------------------------------------------------
def client_model_forward(x, conv_w, conv_b):
    C, H, W = x.shape
    Cout = conv_w.shape[0]
    if C == 3:
        mean = jnp.asarray(IMAGENET_MEAN, jnp.float32)
        std = np.asarray(IMAGENET_STD, np.float32)
    else:
        mean = jnp.full((C,), 0.5, jnp.float32)
        std = np.full((C,), 0.5, np.float32)

    Ho, Wo = _compute_resized_size(H, W)
    Hf_pad = _round_up(Ho, BAND_H)                 # feature rows (band-padded)
    Hp_pad = Hf_pad + 8                            # xpad rows (halo + slack)
    Wp_pad = _round_up(Wo + 2, 128)                # lane-dense padded width
    n_bands = Hf_pad // BAND_H

    # interp matrices with zero conv halo + alignment padding baked in.
    rh = np.zeros((Hp_pad, H), np.float32)
    rh[1:1 + Ho, :] = _bilinear_matrix(Ho, H)
    wk = W if W < 256 else 256                     # input-W reduction chunk
    W_kpad = _round_up(W, wk)
    rwt = np.zeros((W_kpad, Wp_pad), np.float32)
    rwt[:W, 1:1 + Wo] = _bilinear_matrix(Wo, W).T
    rh_bf = jnp.asarray(rh, jnp.bfloat16)
    rwt_bf = jnp.asarray(rwt, jnp.bfloat16)

    wt = 256 if Wp_pad % 256 == 0 else 128         # output column tile
    n_j = Wp_pad // wt
    n_k = W_kpad // wk
    vmem_limit = _vmem_limit_bytes()

    # ---- stage 1: resize with halo --------------------------------------
    xpad = pl.pallas_call(
        _make_resize_kernel(W, wk, need_mask=(W % wk != 0)),
        out_shape=jax.ShapeDtypeStruct((C, Hp_pad, Wp_pad), jnp.float32),
        grid=(C, n_j, n_k),
        in_specs=[
            pl.BlockSpec(memory_space=pltpu.MemorySpace.SMEM),       # mean (C,)
            pl.BlockSpec((1, H, wk), lambda c, j, k: (c, 0, k)),     # x chunk
            pl.BlockSpec((wk, wt), lambda c, j, k: (k, j)),          # RwT tile
            pl.BlockSpec((Hp_pad, H), lambda c, j, k: (0, 0)),       # Rh (resident)
        ],
        out_specs=pl.BlockSpec((1, Hp_pad, wt), lambda c, j, k: (c, 0, j)),
        scratch_shapes=[pltpu.VMEM((H, wt), jnp.float32)],
        compiler_params=pltpu.CompilerParams(
            dimension_semantics=("parallel", "parallel", "arbitrary"),
            vmem_limit_bytes=vmem_limit),
    )(mean, x, rwt_bf, rh_bf)

    # ---- stage 2a: conv + per-band min/max -------------------------------
    w2d = (conv_w / jnp.asarray(std)[None, :, None, None]
           ).reshape(Cout, C * 9).astype(jnp.float32)
    bias = conv_b.astype(jnp.float32)

    roll_np = _roll_like_np()

    def lane_shift(k):  # positive shift amount that moves element j+k to j
        return (Wp_pad - k) if roll_np else k

    feat, bmn, bmx = pl.pallas_call(
        _make_conv_kernel(C, Cout, BAND_H, Ho, Wo, Wp_pad, lane_shift),
        out_shape=(
            jax.ShapeDtypeStruct((Cout, Hf_pad, Wp_pad), jnp.float32),
            jax.ShapeDtypeStruct((n_bands, 8, 128), jnp.float32),
            jax.ShapeDtypeStruct((n_bands, 8, 128), jnp.float32),
        ),
        grid=(n_bands,),
        in_specs=[
            pl.BlockSpec(memory_space=pltpu.MemorySpace.SMEM),  # weights (Cout, C*9)
            pl.BlockSpec(memory_space=pltpu.MemorySpace.SMEM),  # bias (Cout,)
            pl.BlockSpec((C, Hp_pad, Wp_pad), lambda i: (0, 0, 0)),
        ],
        out_specs=(
            pl.BlockSpec((Cout, BAND_H, Wp_pad), lambda i: (0, i, 0)),
            pl.BlockSpec((1, 8, 128), lambda i: (i, 0, 0)),
            pl.BlockSpec((1, 8, 128), lambda i: (i, 0, 0)),
        ),
        compiler_params=pltpu.CompilerParams(
            dimension_semantics=("parallel",),
            vmem_limit_bytes=vmem_limit),
    )(w2d, bias, xpad)

    # ---- quantization scalars (torch does this host-side via .item()) ----
    mn = jnp.min(bmn)
    mx = jnp.max(bmx)
    rng = mx - mn
    # TODO(synk): torch divides by scale without a zero guard; guard keeps it finite.
    scale = jnp.where(rng > 0.0, rng / (QMAX - QMIN), jnp.float32(1.0))
    zero_point = jnp.clip(QMIN - mn / scale, QMIN, QMAX)  # torch: not rounded
    qparams = jnp.stack([1.0 / scale, zero_point]).astype(jnp.float32)

    # ---- stage 2b: quantize ----------------------------------------------
    q = pl.pallas_call(
        _make_quant_kernel(Wo),
        out_shape=jax.ShapeDtypeStruct((Cout, Ho, Wo), jnp.float32),
        grid=(n_bands,),
        in_specs=[
            pl.BlockSpec(memory_space=pltpu.MemorySpace.SMEM),  # [1/scale, zp]
            pl.BlockSpec((Cout, BAND_H, Wp_pad), lambda i: (0, i, 0)),
        ],
        out_specs=pl.BlockSpec((Cout, BAND_H, Wo), lambda i: (0, i, 0)),
        compiler_params=pltpu.CompilerParams(
            dimension_semantics=("parallel",),
            vmem_limit_bytes=vmem_limit),
    )(qparams, feat)

    # batch dim from .unsqueeze(0). float32 quant levels, like the torch module.
    # TODO(synk): .cuda()/.detach()/print(shape) in the PyTorch module are no-ops here.
    return q[None], scale, zero_point


if __name__ == "__main__":
    key = jax.random.PRNGKey(0)
    kx, kw_, kb = jax.random.split(key, 3)
    # single CHW image (ClientModel.forward takes an un-batched image)
    x = jax.random.uniform(kx, (3, 16, 16), dtype=jnp.float32)
    conv_w = jax.random.normal(kw_, (8, 3, 3, 3), dtype=jnp.float32) * 0.1
    conv_b = jax.random.normal(kb, (8,), dtype=jnp.float32) * 0.1

    q, scale, zp = client_model_forward(x, conv_w, conv_b)
    jax.block_until_ready((q, scale, zp))
    assert q.shape == (1, 8, 400, 400) and q.dtype == jnp.float32

    # pure-JAX reference mirroring the kernel's bf16 resize path.
    mean = jnp.asarray(IMAGENET_MEAN, jnp.float32)
    std = jnp.asarray(IMAGENET_STD, jnp.float32)
    Ho, Wo = _compute_resized_size(16, 16)
    hi = jax.lax.Precision.HIGHEST
    xm = (x - mean[:, None, None]).astype(jnp.bfloat16).astype(jnp.float32)
    rwT_b = jnp.asarray(_bilinear_matrix(Wo, 16).T, jnp.bfloat16).astype(jnp.float32)
    rh_b = jnp.asarray(_bilinear_matrix(Ho, 16), jnp.bfloat16).astype(jnp.float32)
    tmp = jnp.einsum("chw,wq->chq", xm, rwT_b, precision=hi)
    tmp = tmp.astype(jnp.bfloat16).astype(jnp.float32)
    resized = jnp.einsum("ph,chq->cpq", rh_b, tmp, precision=hi)      # (3,400,400)
    wf = conv_w / std[None, :, None, None]
    feat_r = jax.lax.conv_general_dilated(
        jnp.pad(resized, ((0, 0), (1, 1), (1, 1)))[None], wf, (1, 1), "VALID",
        dimension_numbers=("NCHW", "OIHW", "NCHW"),
        precision=hi)[0] + conv_b[:, None, None]
    mnr, mxr = jnp.min(feat_r), jnp.max(feat_r)
    rngr = mxr - mnr
    scale_r = jnp.where(rngr > 0, rngr / (QMAX - QMIN), 1.0)
    zp_r = jnp.clip(QMIN - mnr / scale_r, QMIN, QMAX)
    q_r = jnp.round(jnp.clip(feat_r / scale_r + zp_r, QMIN, QMAX))

    assert float(jnp.max(jnp.abs(q[0] - q_r))) <= 2.0
    assert abs(float(scale) - float(scale_r)) <= 1e-2 * float(scale_r) + 1e-6
    assert abs(float(zp) - float(zp_r)) <= 1.0
    print("KERNEL_OK")
</pallas_src>

<mosaic_0001>
module attributes {stable_mosaic.version = 11 : i64} {
  func.func @kernel(%arg0: i32, %arg1: i32, %arg2: i32, %arg3: memref<3xf32, #tpu.memory_space<smem>>, %arg4: memref<1x16x16xf32, #tpu.memory_space<vmem>>, %arg5: memref<16x256xbf16, #tpu.memory_space<vmem>>, %arg6: memref<424x16xbf16, #tpu.memory_space<vmem>>, %arg7: memref<1x424x256xf32, #tpu.memory_space<vmem>>, %arg8: memref<16x256xf32, #tpu.memory_space<vmem>>) attributes {dimension_semantics = [#tpu.dimension_semantics<parallel>, #tpu.dimension_semantics<parallel>, #tpu.dimension_semantics<arbitrary>], iteration_bounds = array<i64: 3, 2, 1>, scalar_prefetch = 0 : i64, scratch_operands = 1 : i64, tpu.core_type = #tpu.core_type<tc>, window_params = [{transform_indices = @transform_0, window_bounds = array<i64: 3>}, {transform_indices = @transform_1, window_bounds = array<i64: 1, 16, 16>}, {transform_indices = @transform_2, window_bounds = array<i64: 16, 256>}, {pipeline_mode = #tpu.pipeline_mode<synchronous>, transform_indices = @transform_3, window_bounds = array<i64: 424, 16>}, {transform_indices = @transform_4, window_bounds = array<i64: 1, 424, 256>}]} {
    %c0_i32 = arith.constant 0 : i32
    %0 = arith.cmpi eq, %arg2, %c0_i32 : i32
    %1 = arith.extui %0 : i1 to i32
    %c0_i32_0 = arith.constant 0 : i32
    %2 = arith.cmpi ne, %1, %c0_i32_0 : i32
    scf.if %2 {
      %cst_11 = arith.constant 0.000000e+00 : f32
      %18 = vector.broadcast %cst_11 : f32 to vector<16x256xf32>
      %c0_12 = arith.constant 0 : index
      %c0_13 = arith.constant 0 : index
      %19 = vector.load %arg8[%c0_12, %c0_13] : memref<16x256xf32, #tpu.memory_space<vmem>>, vector<16x256xf32>
      tpu.vector_store %arg8[%c0_12, %c0_13], %18 {strides = array<i32>} : memref<16x256xf32, #tpu.memory_space<vmem>>, vector<16x256xf32>,
    } else {
    }
    %c0 = arith.constant 0 : index
    %c0_1 = arith.constant 0 : index
    %c0_2 = arith.constant 0 : index
    %3 = vector.load %arg4[%c0, %c0_1, %c0_2] : memref<1x16x16xf32, #tpu.memory_space<vmem>>, vector<1x16x16xf32>
    %4 = vector.shape_cast %3 : vector<1x16x16xf32> to vector<16x16xf32>
    %5 = arith.index_cast %arg0 : i32 to index
    %6 = memref.load %arg3[%5] : memref<3xf32, #tpu.memory_space<smem>>
    %7 = vector.broadcast %6 : f32 to vector<16x16xf32>
    %8 = arith.subf %4, %7 : vector<16x16xf32>
    %c0_3 = arith.constant 0 : index
    %c0_4 = arith.constant 0 : index
    %9 = vector.load %arg8[%c0_3, %c0_4] : memref<16x256xf32, #tpu.memory_space<vmem>>, vector<16x256xf32>
    %10 = arith.truncf %8 : vector<16x16xf32> to vector<16x16xbf16>
    %c0_5 = arith.constant 0 : index
    %c0_6 = arith.constant 0 : index
    %11 = vector.load %arg5[%c0_5, %c0_6] : memref<16x256xbf16, #tpu.memory_space<vmem>>, vector<16x256xbf16>
    %cst = arith.constant dense<0.000000e+00> : vector<16x256xf32>
    %12 = tpu.matmul %10, %11, %cst {dimension_numbers = #tpu.dot_dimension_numbers<[1], [0], [0], [1], [0, 0, 1, 1], [], []>} : vector<16x16xbf16>, vector<16x256xbf16>, vector<16x256xf32> -> vector<16x256xf32>
    %13 = arith.addf %9, %12 : vector<16x256xf32>
    %c0_7 = arith.constant 0 : index
    %c0_8 = arith.constant 0 : index
    %14 = vector.load %arg8[%c0_7, %c0_8] : memref<16x256xf32, #tpu.memory_space<vmem>>, vector<16x256xf32>
    tpu.vector_store %arg8[%c0_7, %c0_8], %13 {strides = array<i32>} : memref<16x256xf32, #tpu.memory_space<vmem>>, vector<16x256xf32>,
    %c0_i32_9 = arith.constant 0 : i32
    %15 = arith.cmpi eq, %arg2, %c0_i32_9 : i32
    %16 = arith.extui %15 : i1 to i32
    %c0_i32_10 = arith.constant 0 : i32
    %17 = arith.cmpi ne, %16, %c0_i32_10 : i32
    scf.if %17 {
      %c0_11 = arith.constant 0 : index
      %c0_12 = arith.constant 0 : index
      %18 = vector.load %arg6[%c0_11, %c0_12] : memref<424x16xbf16, #tpu.memory_space<vmem>>, vector<424x16xbf16>
      %c0_13 = arith.constant 0 : index
      %c0_14 = arith.constant 0 : index
      %19 = vector.load %arg8[%c0_13, %c0_14] : memref<16x256xf32, #tpu.memory_space<vmem>>, vector<16x256xf32>
      %20 = arith.truncf %19 : vector<16x256xf32> to vector<16x256xbf16>
      %cst_15 = arith.constant dense<0.000000e+00> : vector<424x256xf32>
      %21 = tpu.matmul %18, %20, %cst_15 {dimension_numbers = #tpu.dot_dimension_numbers<[1], [0], [0], [1], [0, 0, 1, 1], [], []>} : vector<424x16xbf16>, vector<16x256xbf16>, vector<424x256xf32> -> vector<424x256xf32>
      %c0_16 = arith.constant 0 : index
      %c0_17 = arith.constant 0 : index
      %c0_18 = arith.constant 0 : index
      %22 = vector.load %arg7[%c0_16, %c0_17, %c0_18] : memref<1x424x256xf32, #tpu.memory_space<vmem>>, vector<1x424x256xf32>
      %23 = vector.shape_cast %22 : vector<1x424x256xf32> to vector<424x256xf32>
      %24 = vector.shape_cast %21 : vector<424x256xf32> to vector<1x424x256xf32>
      tpu.vector_store %arg7[%c0_16, %c0_17, %c0_18], %24 {strides = array<i32>} : memref<1x424x256xf32, #tpu.memory_space<vmem>>, vector<1x424x256xf32>,
    } else {
    }
    return
  }
  func.func @transform_0(%arg0: i32, %arg1: i32, %arg2: i32) -> i32 {
    %c0_i32 = arith.constant 0 : i32
    %c0_i32_0 = arith.constant 0 : i32
    return %c0_i32 : i32
  }
  func.func @transform_1(%arg0: i32, %arg1: i32, %arg2: i32) -> (i32, i32, i32) {
    %c0_i32 = arith.constant 0 : i32
    %c0_i32_0 = arith.constant 0 : i32
    return %arg0, %c0_i32, %arg2 : i32, i32, i32
  }
  func.func @transform_2(%arg0: i32, %arg1: i32, %arg2: i32) -> (i32, i32) {
    %c0_i32 = arith.constant 0 : i32
    return %arg2, %arg1 : i32, i32
  }
  func.func @transform_3(%arg0: i32, %arg1: i32, %arg2: i32) -> (i32, i32) {
    %c0_i32 = arith.constant 0 : i32
    %c0_i32_0 = arith.constant 0 : i32
    %c0_i32_1 = arith.constant 0 : i32
    return %c0_i32, %c0_i32_0 : i32, i32
  }
  func.func @transform_4(%arg0: i32, %arg1: i32, %arg2: i32) -> (i32, i32, i32) {
    %c0_i32 = arith.constant 0 : i32
    %c0_i32_0 = arith.constant 0 : i32
    return %arg0, %c0_i32, %arg1 : i32, i32, i32
  }
}

</mosaic_0001>

<llo_original>
// kernel: tpu_custom_call.1
$region0: #{tpu_custom_call.1}
  #allocation0 [shape = 'u32[]', space=smem, size = 0x4, offset = 0x4, fixed_abs, tag = 'smem constant byte address 0x4 - core index']
  #allocation1 [shape = 'u32[144,128]{1,0:T(1,128)}', space=vmem, size = 0x12000, scoped, tag = 'internal scratch']
  #allocation2 [shape = 'f32[16,256]{1,0:T(8,128)}', space=vmem, size = 0x4000, scoped, tag = 'scratch operand']
  %s0 = inlined_call_operand.hbm [shape: f32[3], index: 0, kind: input, shape index: {}]
  %s1 = inlined_call_operand.hbm [shape: f32[3,16,16], index: 1, kind: input, shape index: {}]
  %s2 = inlined_call_operand.hbm [shape: bf16[16,512], index: 2, kind: input, shape index: {}]
  %s3 = inlined_call_operand.hbm [shape: bf16[424,16], index: 3, kind: input, shape index: {}]
  %s4 = inlined_call_operand.hbm [shape: f32[3,424,512], index: 4, kind: output, shape index: {}]
  %s5 = sld [smem:[#allocation0]]
  $region73: #{tpu_custom_call.1} parent=0
    _
  %s7 = ssub.s32 1, %s5
  %s8 = scalar_select 0, %s7, %s5
  $region1: #{tpu_custom_call.1} parent=0
    #allocation3 [shape = 'u8[512]{0}', space=smem, size = 0x200, scoped, tag = 'input window, operand 0, single buffered']
    #allocation4 [shape = 's32[2]{0}', space=sflag, size = 0x8, scoped, tag = 'scoped memory for tpu_custom_call.1']
    #allocation5 [shape = 's32[2]{0}', space=sflag, size = 0x8, scoped, tag = 'scoped memory for tpu_custom_call.1']
    #allocation6 [shape = 's32[2]{0}', space=sflag, size = 0x8, scoped, tag = 'scoped memory for tpu_custom_call.1']
    #allocation7 [shape = 'u8[16384]{0}', space=vmem, size = 0x4000, scoped, tag = 'input window, operand 1']
    #allocation8 [shape = 'u8[16384]{0}', space=vmem, size = 0x4000, scoped, tag = 'input window, operand 2']
    #allocation9 [shape = 's32[2]{0}', space=sflag, size = 0x8, scoped, tag = 'scoped memory for tpu_custom_call.1']
    #allocation10 [shape = 'u8[108544]{0}', space=vmem, size = 0x1a800, scoped, tag = 'input window, operand 3, single buffered']
    #allocation11 [shape = 'u8[868352]{0}', space=vmem, size = 0xd4000, scoped, tag = 'output window, operand 0']
    %9 = vsyncpa [#allocation6], 0
    %10 = vsyncpa [#allocation4], 0
    %s11 = scalar_lea.sflag [#allocation4], 1
    %12 = vsyncpa %s11, 0
    %13 = vsyncpa [#allocation9], 0
    %s14 = scalar_lea.sflag [#allocation9], 1
    %15 = vsyncpa %s14, 0
    %16 = vsyncpa [#allocation5], 0
    %s17 = scalar_lea.sflag [#allocation5], 1
    %18 = vsyncpa %s17, 0
    loop: start=0, step=1, limit=8
    $region2: #{tpu_custom_call.1} parent=1 // loop_pre_header
      _
    $region3: #{tpu_custom_call.1} parent=1 // loop_header
      %s20 = sphi 0, %s24
      %p21 = scmp.ge.s32.totalorder %s20, 8
      %s27 = sphi 0, %s46
      %s28 = sphi 0, %s42
      %s29 = sphi 0, %s38
      %s30 = sphi 0, %s27
      %s31 = sphi 0, %s28
      %s32 = sphi 0, %s29
      %s33 = sphi 0, %s30
      %s34 = sphi 0, %s31
      %s35 = sphi 0, %s32
      %s47 = sphi 0, %s47
      %s49 = sphi 0, %s47
      %s50 = sphi 0, %s49
      %s64 = sphi 0, %s50
      %s72 = sphi 0, %s74
      %s75 = sphi 0, %s72
      %s76 = sphi 0, %s75
      %s92 = sphi 0, %s76
      %s100 = sphi 0, %s102
      %s103 = sphi 0, %s100
      %s104 = sphi 0, %s103
      %s120 = sphi 0, %s104
      %s124 = sphi 0, %s124
      %s126 = sphi 0, %s124
      %s127 = sphi 0, %s126
      %s141 = sphi 0, %s127
      %s149 = sphi 0, %s151
      %s152 = sphi 0, %s149
      %s153 = sphi 0, %s152
      %s169 = sphi 0, %s153
    $region4: #{tpu_custom_call.1} parent=1 // loop_header_branch
      %23 = sbr.rel (%p21) target = $region8
    $region5: #{tpu_custom_call.1} parent=1 // loop_body
      %s25 = ssub.s32 %s20, 1
      %s26 = ssub.s32 %s20, 2
      %s36 = sadd.s32 1, %s29
      %p37 = scmp.ge.s32.totalorder %s36, 1
      %s38 = scalar_select %p37, 0, %s36
      %s39 = sadd.s32 1, %s28
      %s40 = scalar_select %p37, %s39, %s28
      %p41 = scmp.ge.s32.totalorder %s40, 2
      %s42 = scalar_select %p41, 0, %s40
      %s43 = sadd.s32 1, %s27
      %s44 = scalar_select %p41, %s43, %s27
      %p45 = scmp.ge.s32.totalorder %s44, 3
      %s46 = scalar_select %p45, 0, %s44
      %s48 = sadd.s32 %s47, 1
      %p51 = scmp.eq.s32.totalorder %s20, 5
      %p52 = scmp.ne.s32.totalorder %s47, %s49
      %p53 = scmp.eq.s32.totalorder %s20, 0
      %p54 = por %p52, %p53
      %p55 = scmp.ne.s32.totalorder %s47, %s49
      %p56 = scmp.eq.s32.totalorder %s25, 5
      %p57 = por %p55, %p56
      %p58 = scmp.ne.s32.totalorder %s49, %s50
      %p59 = scmp.eq.s32.totalorder %s25, 0
      %p60 = por %p58, %p59
      %p61 = scmp.ne.s32.totalorder %s49, %s50
      %p62 = scmp.eq.s32.totalorder %s26, 5
      %p63 = por %p61, %p62
      %p65 = scmp.ne.s32.totalorder %s50, %s64
      %p66 = scmp.eq.s32.totalorder %s26, 0
      %p67 = por %p65, %p66
      %s68 = ssub.s32 %s27, %s46
      %s69 = ssub.s32 %s29, %s38
      %s70 = sor.u32 %s68, %s69
      %p71 = scmp.eq.s32.totalorder %s70, 0
      %s73 = sadd.s32 %s72, 1
      %s74 = scalar_select %p71, %s72, %s73
      %p77 = pneg %p71
      %p78 = scmp.eq.s32.totalorder %s20, 5
      %p79 = por %p77, %p78
      %p80 = scmp.ne.s32.totalorder %s72, %s75
      %p81 = scmp.eq.s32.totalorder %s20, 0
      %p82 = por %p80, %p81
      %p83 = scmp.ne.s32.totalorder %s72, %s75
      %p84 = scmp.eq.s32.totalorder %s25, 5
      %p85 = por %p83, %p84
      %p86 = scmp.ne.s32.totalorder %s75, %s76
      %p87 = scmp.eq.s32.totalorder %s25, 0
      %p88 = por %p86, %p87
      %p89 = scmp.ne.s32.totalorder %s75, %s76
      %p90 = scmp.eq.s32.totalorder %s26, 5
      %p91 = por %p89, %p90
      %p93 = scmp.ne.s32.totalorder %s76, %s92
      %p94 = scmp.eq.s32.totalorder %s26, 0
      %p95 = por %p93, %p94
      %s96 = ssub.s32 %s29, %s38
      %s97 = ssub.s32 %s28, %s42
      %s98 = sor.u32 %s96, %s97
      %p99 = scmp.eq.s32.totalorder %s98, 0
      %s101 = sadd.s32 %s100, 1
      %s102 = scalar_select %p99, %s100, %s101
      %p105 = pneg %p99
      %p106 = scmp.eq.s32.totalorder %s20, 5
      %p107 = por %p105, %p106
      %p108 = scmp.ne.s32.totalorder %s100, %s103
      %p109 = scmp.eq.s32.totalorder %s20, 0
      %p110 = por %p108, %p109
      %p111 = scmp.ne.s32.totalorder %s100, %s103
      %p112 = scmp.eq.s32.totalorder %s25, 5
      %p113 = por %p111, %p112
      %p114 = scmp.ne.s32.totalorder %s103, %s104
      %p115 = scmp.eq.s32.totalorder %s25, 0
      %p116 = por %p114, %p115
      %p117 = scmp.ne.s32.totalorder %s103, %s104
      %p118 = scmp.eq.s32.totalorder %s26, 5
      %p119 = por %p117, %p118
      %p121 = scmp.ne.s32.totalorder %s104, %s120
      %p122 = scmp.eq.s32.totalorder %s26, 0
      %p123 = por %p121, %p122
      %s125 = sadd.s32 %s124, 1
      %p128 = scmp.eq.s32.totalorder %s20, 5
      %p129 = scmp.ne.s32.totalorder %s124, %s126
      %p130 = scmp.eq.s32.totalorder %s20, 0
      %p131 = por %p129, %p130
      %p132 = scmp.ne.s32.totalorder %s124, %s126
      %p133 = scmp.eq.s32.totalorder %s25, 5
      %p134 = por %p132, %p133
      %p135 = scmp.ne.s32.totalorder %s126, %s127
      %p136 = scmp.eq.s32.totalorder %s25, 0
      %p137 = por %p135, %p136
      %p138 = scmp.ne.s32.totalorder %s126, %s127
      %p139 = scmp.eq.s32.totalorder %s26, 5
      %p140 = por %p138, %p139
      %p142 = scmp.ne.s32.totalorder %s127, %s141
      %p143 = scmp.eq.s32.totalorder %s26, 0
      %p144 = por %p142, %p143
      %s145 = ssub.s32 %s27, %s46
      %s146 = ssub.s32 %s28, %s42
      %s147 = sor.u32 %s145, %s146
      %p148 = scmp.eq.s32.totalorder %s147, 0
      %s150 = sadd.s32 %s149, 1
      %s151 = scalar_select %p148, %s149, %s150
      %p154 = pneg %p148
      %p155 = scmp.eq.s32.totalorder %s20, 5
      %p156 = por %p154, %p155
      %p157 = scmp.ne.s32.totalorder %s149, %s152
      %p158 = scmp.eq.s32.totalorder %s20, 0
      %p159 = por %p157, %p158
      %p160 = scmp.ne.s32.totalorder %s149, %s152
      %p161 = scmp.eq.s32.totalorder %s25, 5
      %p162 = por %p160, %p161
      %p163 = scmp.ne.s32.totalorder %s152, %s153
      %p164 = scmp.eq.s32.totalorder %s25, 0
      %p165 = por %p163, %p164
      %p166 = scmp.ne.s32.totalorder %s152, %s153
      %p167 = scmp.eq.s32.totalorder %s26, 5
      %p168 = por %p166, %p167
      %p170 = scmp.ne.s32.totalorder %s153, %s169
      %p171 = scmp.eq.s32.totalorder %s26, 0
      %p172 = por %p170, %p171
      %p173 = scmp.le.s32.totalorder 1, %s20
      %p174 = scmp.lt.s32.totalorder %s20, 7
      %p175 = pnand %p173, %p174
      %p176 = pneg %p175
      // Predicated region
      $region9: #{tpu_custom_call.1} parent=5 // pred_check
        _
      $region10: #{tpu_custom_call.1} parent=5 // pred_check_branch
        %178 = sbr.rel (%p175) target = $region12
      $region11: #{tpu_custom_call.1} parent=5 // pred_region
        %s179 = ssub.s32 %s20, 1
        // Predicated region
        $region13: #{tpu_custom_call.1} parent=11 // pred_check
          %p180 = pneg %p60
        $region14: #{tpu_custom_call.1} parent=11 // pred_check_branch
          %182 = sbr.rel (%p180) target = $region16
        $region15: #{tpu_custom_call.1} parent=11 // pred_region
          %s184 = ssub.s32 16, 16
          %185 = vsyncadd [#allocation6], %s184
          %188 = dma.hbm_to_smem %s0, 16, [#allocation3], [#allocation6]
        $region16: #{tpu_custom_call.1} parent=11 // pred_fallthru
          _
        // Predicated region
        $region17: #{tpu_custom_call.1} parent=11 // pred_check
          %p189 = pneg %p137
        $region18: #{tpu_custom_call.1} parent=11 // pred_check_branch
          %191 = sbr.rel (%p189) target = $region20
        $region19: #{tpu_custom_call.1} parent=11 // pred_region
          %s193 = ssub.s32 3392, 3392
          %194 = vsyncadd [#allocation9], %s193
          %s195 = sshll.u32 [#allocation10], 4
          %s196 = int_to_ptr.vmem [resolvable:$true] %s195
          %201 = dma.hbm_to_vmem [thread:$0]  %s3, 3392, %s196, [#allocation9], 64, 64, 4
        $region20: #{tpu_custom_call.1} parent=11 // pred_fallthru
          _
      $region12: #{tpu_custom_call.1} parent=5 // pred_fallthru
        _
      %p202 = scmp.lt.s32.totalorder %s20, 6
      // Predicated region
      $region21: #{tpu_custom_call.1} parent=5 // pred_check
        %p203 = pneg %p202
      $region22: #{tpu_custom_call.1} parent=5 // pred_check_branch
        %205 = sbr.rel (%p203) target = $region24
      $region23: #{tpu_custom_call.1} parent=5 // pred_region
        // Predicated region
        $region25: #{tpu_custom_call.1} parent=23 // pred_check
          %p206 = pneg %p82
        $region26: #{tpu_custom_call.1} parent=23 // pred_check_branch
          %208 = sbr.rel (%p206) target = $region28
        $region27: #{tpu_custom_call.1} parent=23 // pred_region
          %s209 = sand.u32 %s72, 1
          %s210 = scalar_lea.sflag [#allocation4], %s209
          %s211 = sand.u32 %s72, 1
          %s212 = smul.addr %s211, 16
          %s213 = scalar_lea.vmem [#allocation7], %s212
          %s215 = ssub.s32 256, 256
          %216 = vsyncadd %s210, %s215
          %s217 = smul.addr %s27, 2
          %s218 = sadd.s32 %s29, %s217
          %s219 = smul.addr %s218, 128
          %s220 = scalar_lea.hbm %s1, %s219
          %s221 = sshll.u32 %s213, 4
          %s222 = int_to_ptr.vmem [resolvable:$true] %s221
          %227 = dma.hbm_to_vmem [thread:$0]  %s220, 256, %s222, %s210, 128, 128, 8
        $region28: #{tpu_custom_call.1} parent=23 // pred_fallthru
          _
        // Predicated region
        $region29: #{tpu_custom_call.1} parent=23 // pred_check
          %p228 = pneg %p110
        $region30: #{tpu_custom_call.1} parent=23 // pred_check_branch
          %230 = sbr.rel (%p228) target = $region32
        $region31: #{tpu_custom_call.1} parent=23 // pred_region
          %s231 = sand.u32 %s20, 1
          %s232 = scalar_lea.sflag [#allocation9], %s231
          %s233 = sand.u32 %s100, 1
          %s234 = smul.addr %s233, 16
          %s235 = scalar_lea.vmem [#allocation8], %s234
          %s236 = smul.u32 2, %s29
          %s237 = smul.u32 2, %s28
          %s239 = ssub.s32 256, 256
          %240 = vsyncadd %s232, %s239
          %s241 = smul.addr %s236, 4
          %s242 = sadd.s32 %s237, %s241
          %s243 = smul.addr %s242, 64
          %s244 = scalar_lea.hbm %s2, %s243
          %s245 = sshll.u32 %s235, 4
          %s246 = int_to_ptr.vmem [resolvable:$true] %s245
          %251 = dma.hbm_to_vmem [thread:$0]  %s244, 256, %s246, %s232, 256, 128, 8
        $region32: #{tpu_custom_call.1} parent=23 // pred_fallthru
          _
      $region24: #{tpu_custom_call.1} parent=5 // pred_fallthru
        _
      %p252 = scmp.le.s32.totalorder 1, %s20
      %p253 = scmp.lt.s32.totalorder %s20, 7
      %p254 = pnand %p252, %p253
      %p255 = pneg %p254
      // Predicated region
      $region33: #{tpu_custom_call.1} parent=5 // pred_check
        _
      $region34: #{tpu_custom_call.1} parent=5 // pred_check_branch
        %257 = sbr.rel (%p254) target = $region36
      $region35: #{tpu_custom_call.1} parent=5 // pred_region
        %s258 = ssub.s32 %s20, 1
        // Predicated region
        $region37: #{tpu_custom_call.1} parent=35 // pred_check
          %p259 = pneg %p60
        $region38: #{tpu_custom_call.1} parent=35 // pred_check_branch
          %261 = sbr.rel (%p259) target = $region40
        $region39: #{tpu_custom_call.1} parent=35 // pred_region
          %262 = dma.done [#allocation6], 16
        $region40: #{tpu_custom_call.1} parent=35 // pred_fallthru
          _
        %s263 = sand.u32 %s75, 1
        %s264 = scalar_lea.sflag [#allocation4], %s263
        %s265 = sand.u32 %s75, 1
        %s266 = smul.addr %s265, 16
        %s267 = scalar_lea.vmem [#allocation7], %s266
        // Predicated region
        $region41: #{tpu_custom_call.1} parent=35 // pred_check
          %p268 = pneg %p88
        $region42: #{tpu_custom_call.1} parent=35 // pred_check_branch
          %270 = sbr.rel (%p268) target = $region44
        $region43: #{tpu_custom_call.1} parent=35 // pred_region
          %271 = dma.done %s264, 256
        $region44: #{tpu_custom_call.1} parent=35 // pred_fallthru
          _
        %s272 = sand.u32 %s25, 1
        %s273 = scalar_lea.sflag [#allocation9], %s272
        %s274 = sand.u32 %s103, 1
        %s275 = smul.addr %s274, 16
        %s276 = scalar_lea.vmem [#allocation8], %s275
        // Predicated region
        $region45: #{tpu_custom_call.1} parent=35 // pred_check
          %p277 = pneg %p116
        $region46: #{tpu_custom_call.1} parent=35 // pred_check_branch
          %279 = sbr.rel (%p277) target = $region48
        $region47: #{tpu_custom_call.1} parent=35 // pred_region
          %280 = dma.done %s273, 256
        $region48: #{tpu_custom_call.1} parent=35 // pred_fallthru
          _
        // Predicated region
        $region49: #{tpu_custom_call.1} parent=35 // pred_check
          %p281 = pneg %p137
        $region50: #{tpu_custom_call.1} parent=35 // pred_check_branch
          %283 = sbr.rel (%p281) target = $region52
        $region51: #{tpu_custom_call.1} parent=35 // pred_region
          %284 = dma.done [#allocation9], 3392
        $region52: #{tpu_custom_call.1} parent=35 // pred_fallthru
          _
        %285 = sfence
        %p286 = pneg %p60
        %p287 = pneg %p57
        %s288 = sand.u32 %s75, 1
        %s289 = scalar_lea.sflag [#allocation4], %s288
        %s290 = sand.u32 %s75, 1
        %s291 = smul.addr %s290, 16
        %s292 = scalar_lea.vmem [#allocation7], %s291
        %p293 = pneg %p88
        %p294 = pneg %p85
        %s295 = sand.u32 %s25, 1
        %s296 = scalar_lea.sflag [#allocation9], %s295
        %s297 = sand.u32 %s103, 1
        %s298 = smul.addr %s297, 16
        %s299 = scalar_lea.vmem [#allocation8], %s298
        %p300 = pneg %p116
        %p301 = pneg %p113
        %p302 = pneg %p137
        %p303 = pneg %p134
        %p304 = pneg %p165
        %p305 = pneg %p162
        %s306 = sand.u32 %s152, 1
        %s307 = scalar_lea.sflag [#allocation5], %s306
        %s308 = sand.u32 %s152, 1
        %s309 = smul.addr %s308, 848
        %s310 = scalar_lea.vmem [#allocation11], %s309
        %s311 = smul.u32 2, %s32
        %s312 = smul.u32 2, %s31
        %s313 = smul.u32 2, %s31
        %p315 = scmp.eq.s32.totalorder %s32, 0
        // Predicated region
        $region53: #{tpu_custom_call.1} parent=35 // pred_check
          %p316 = pneg %p315
        $region54: #{tpu_custom_call.1} parent=35 // pred_check_branch
          %318 = sbr.rel (%p316) target = $region56
        $region55: #{tpu_custom_call.1} parent=35 // pred_region
          %319 = vst [vmem:[#allocation2] sm:$0xff] 0.0
          %320 = vst [vmem:[#allocation2 + $0x8] sm:$0xff] 0.0
          %321 = vst [vmem:[#allocation2 + $0x10] sm:$0xff] 0.0
          %322 = vst [vmem:[#allocation2 + $0x18] sm:$0xff] 0.0
        $region56: #{tpu_custom_call.1} parent=35 // pred_fallthru
          _
        %v323 = vld [vmem:[%s267] sm:$0xff]
        %v324 = vld [vmem:[%s267 + $0x8] sm:$0xff]
        %s325 = sld [smem:[#allocation3 + %s30]]
        %v326 = vstv %s325
        %v327 = vsub.f32 %v323, %v326
        %v328 = vsub.f32 %v324, %v326
        %v329 = vld [vmem:[#allocation2] sm:$0xff]
        %v330 = vld [vmem:[#allocation2 + $0x8] sm:$0xff]
        %v331 = vld [vmem:[#allocation2 + $0x10] sm:$0xff]
        %v332 = vld [vmem:[#allocation2 + $0x18] sm:$0xff]
        %v333 = vpack.c.bf16 %v328, %v327
        %v334 = vld [vmem:[%s276] sm:$0xff]
        %v335 = vld [vmem:[%s276 + $0x8] sm:$0xff]
        %v338 = vunpack.c.l.b16 %v334
        %v339 = vunpack.c.h.b16 %v334
        %v340 = vunpack.c.l.b16 %v335
        %v341 = vunpack.c.h.b16 %v335
        %v342 = vpack.c.b16 %v340, %v338
        %v343 = vpack.c.b16 %v341, %v339
        %vm346 = vcmask 130048
        %v348 = vsel %vm346, %v333, 0
        %350 = vmatprep.subr.bf16.mxu0 %v343
        %351 = vmatpush1.bf16.msra.mxu0 %v342
        %352 = vmatprep.subr.bf16.mxu0 0
        %353 = vmatpush1.bf16.msra.mxu0 0
        %354 = vmatprep.subr.bf16.mxu0 0
        %355 = vmatpush1.bf16.msra.mxu0 0
        %356 = vmatprep.subr.bf16.mxu0 0
        %357 = vmatpush1.bf16.msra.mxu0 0
        %358 = vmatprep.subr.bf16.mxu0 0
        %359 = vmatpush1.bf16.msra.mxu0 0
        %360 = vmatprep.subr.bf16.mxu0 0
        %361 = vmatpush1.bf16.msra.mxu0 0
        %362 = vmatprep.subr.bf16.mxu0 0
        %363 = vmatpush1.bf16.msra.mxu0 0
        %364 = vmatprep.subr.bf16.mxu0 0
        %365 = vmatpush1.bf16.msra.mxu0 0
        %366 = vmatprep.subr.bf16.mxu0 0
        %367 = vmatpush1.bf16.msra.mxu0 0
        %368 = vmatprep.subr.bf16.mxu0 0
        %369 = vmatpush1.bf16.msra.mxu0 0
        %370 = vmatprep.subr.bf16.mxu0 0
        %371 = vmatpush1.bf16.msra.mxu0 0
        %372 = vmatprep.subr.bf16.mxu0 0
        %373 = vmatpush1.bf16.msra.mxu0 0
        %374 = vmatprep.subr.bf16.mxu0 0
        %375 = vmatpush1.bf16.msra.mxu0 0
        %376 = vmatprep.subr.bf16.mxu0 0
        %377 = vmatpush1.bf16.msra.mxu0 0
        %378 = vmatprep.subr.bf16.mxu0 0
        %379 = vmatpush1.bf16.msra.mxu0 0
        %380 = vmatprep.subr.bf16.mxu0 0
        %381 = vmatpush1.bf16.msra.mxu0 0
        %382 = vmatprep.mubr.bf16.mxu0 0
        %383 = vmatmul.mubr.bf16.gmra.mrb[0].mxu0 %v348
        %v384 = vpop.f32.mrb[0].mxu0
        %v385 = vadd.f32 0.0, %v384
        %v386 = vpop.f32.mrb[0].mxu0
        %v387 = vadd.f32 0.0, %v386
        %v388 = vpop.f32.mrb[0].mxu0
        %v389 = vadd.f32 0.0, %v388
        %v390 = vpop.f32.mrb[0].mxu0
        %v391 = vadd.f32 0.0, %v390
        %392 = vdwg.mxu0
        %v393 = vadd.f32 %v329, %v385
        %v394 = vadd.f32 %v330, %v387
        %v395 = vadd.f32 %v331, %v389
        %v396 = vadd.f32 %v332, %v391
        %397 = vst [vmem:[#allocation2] sm:$0xff] %v393
        %398 = vst [vmem:[#allocation2 + $0x8] sm:$0xff] %v394
        %399 = vst [vmem:[#allocation2 + $0x10] sm:$0xff] %v395
        %400 = vst [vmem:[#allocation2 + $0x18] sm:$0xff] %v396
        // Predicated region
        $region57: #{tpu_custom_call.1} parent=35 // pred_check
          %p401 = pneg %p315
        $region58: #{tpu_custom_call.1} parent=35 // pred_check_branch
          %403 = sbr.rel (%p401) target = $region60
        $region59: #{tpu_custom_call.1} parent=35 // pred_region
          %v404 = vld [vmem:[#allocation10] sm:$0xf]
          %v405 = vld [vmem:[#allocation10 + $0x4] sm:$0xf]
          %v406 = vld [vmem:[#allocation10 + $0x8] sm:$0xf]
          %v407 = vld [vmem:[#allocation10 + $0xc] sm:$0xf]
          %v408 = vld [vmem:[#allocation10 + $0x10] sm:$0xf]
          %v409 = vld [vmem:[#allocation10 + $0x14] sm:$0xf]
          %v410 = vld [vmem:[#allocation10 + $0x18] sm:$0xf]
          %v411 = vld [vmem:[#allocation10 + $0x1c] sm:$0xf]
          %v412 = vld [vmem:[#allocation10 + $0x20] sm:$0xf]
          %v413 = vld [vmem:[#allocation10 + $0x24] sm:$0xf]
          %v414 = vld [vmem:[#allocation10 + $0x28] sm:$0xf]
          %v415 = vld [vmem:[#allocation10 + $0x2c] sm:$0xf]
          %v416 = vld [vmem:[#allocation10 + $0x30] sm:$0xf]
          %v417 = vld [vmem:[#allocation10 + $0x34] sm:$0xf]
          %v418 = vld [vmem:[#allocation10 + $0x38] sm:$0xf]
          %v419 = vld [vmem:[#allocation10 + $0x3c] sm:$0xf]
          %v420 = vld [vmem:[#allocation10 + $0x40] sm:$0xf]
          %v421 = vld [vmem:[#allocation10 + $0x44] sm:$0xf]
          %v422 = vld [vmem:[#allocation10 + $0x48] sm:$0xf]
          %v423 = vld [vmem:[#allocation10 + $0x4c] sm:$0xf]
          %v424 = vld [vmem:[#allocation10 + $0x50] sm:$0xf]
          %v425 = vld [vmem:[#allocation10 + $0x54] sm:$0xf]
          %v426 = vld [vmem:[#allocation10 + $0x58] sm:$0xf]
          %v427 = vld [vmem:[#allocation10 + $0x5c] sm:$0xf]
          %v428 = vld [vmem:[#allocation10 + $0x60] sm:$0xf]
          %v429 = vld [vmem:[#allocation10 + $0x64] sm:$0xf]
          %v430 = vld [vmem:[#allocation10 + $0x68] sm:$0xf]
          %v431 = vld [vmem:[#allocation10 + $0x6c] sm:$0xf]
          %v432 = vld [vmem:[#allocation10 + $0x70] sm:$0xf]
          %v433 = vld [vmem:[#allocation10 + $0x74] sm:$0xf]
          %v434 = vld [vmem:[#allocation10 + $0x78] sm:$0xf]
          %v435 = vld [vmem:[#allocation10 + $0x7c] sm:$0xf]
          %v436 = vld [vmem:[#allocation10 + $0x80] sm:$0xf]
          %v437 = vld [vmem:[#allocation10 + $0x84] sm:$0xf]
          %v438 = vld [vmem:[#allocation10 + $0x88] sm:$0xf]
          %v439 = vld [vmem:[#allocation10 + $0x8c] sm:$0xf]
          %v440 = vld [vmem:[#allocation10 + $0x90] sm:$0xf]
          %v441 = vld [vmem:[#allocation10 + $0x94] sm:$0xf]
          %v442 = vld [vmem:[#allocation10 + $0x98] sm:$0xf]
          %v443 = vld [vmem:[#allocation10 + $0x9c] sm:$0xf]
          %v444 = vld [vmem:[#allocation10 + $0xa0] sm:$0xf]
          %v445 = vld [vmem:[#allocation10 + $0xa4] sm:$0xf]
          %v446 = vld [vmem:[#allocation10 + $0xa8] sm:$0xf]
          %v447 = vld [vmem:[#allocation10 + $0xac] sm:$0xf]
          %v448 = vld [vmem:[#allocation10 + $0xb0] sm:$0xf]
          %v449 = vld [vmem:[#allocation10 + $0xb4] sm:$0xf]
          %v450 = vld [vmem:[#allocation10 + $0xb8] sm:$0xf]
          %v451 = vld [vmem:[#allocation10 + $0xbc] sm:$0xf]
          %v452 = vld [vmem:[#allocation10 + $0xc0] sm:$0xf]
          %v453 = vld [vmem:[#allocation10 + $0xc4] sm:$0xf]
          %v454 = vld [vmem:[#allocation10 + $0xc8] sm:$0xf]
          %v455 = vld [vmem:[#allocation10 + $0xcc] sm:$0xf]
          %v456 = vld [vmem:[#allocation10 + $0xd0] sm:$0xf]
          %v457 = vld [vmem:[#allocation2] sm:$0xff]
          %v458 = vld [vmem:[#allocation2 + $0x8] sm:$0xff]
          %v459 = vld [vmem:[#allocation2 + $0x10] sm:$0xff]
          %v460 = vld [vmem:[#allocation2 + $0x18] sm:$0xff]
          %v461 = vpack.c.bf16 %v459, %v457
          %v462 = vpack.c.bf16 %v460, %v458
          %v516 = vunpack.c.l.b16 %v404
          %v517 = vunpack.c.l.b16 %v405
          %v518 = vunpack.c.l.b16 %v406
          %v519 = vunpack.c.l.b16 %v407
          %v520 = vunpack.c.l.b16 %v408
          %v521 = vunpack.c.l.b16 %v409
          %v522 = vunpack.c.l.b16 %v410
          %v523 = vunpack.c.l.b16 %v411
          %v524 = vunpack.c.l.b16 %v412
          %v525 = vunpack.c.l.b16 %v413
          %v526 = vunpack.c.l.b16 %v414
          %v527 = vunpack.c.l.b16 %v415
          %v528 = vunpack.c.l.b16 %v416
          %v529 = vunpack.c.l.b16 %v417
          %v530 = vunpack.c.l.b16 %v418
          %v531 = vunpack.c.l.b16 %v419
          %v532 = vunpack.c.l.b16 %v420
          %v533 = vunpack.c.l.b16 %v421
          %v534 = vunpack.c.l.b16 %v422
          %v535 = vunpack.c.l.b16 %v423
          %v536 = vunpack.c.l.b16 %v424
          %v537 = vunpack.c.l.b16 %v425
          %v538 = vunpack.c.l.b16 %v426
          %v539 = vunpack.c.l.b16 %v427
          %v540 = vunpack.c.l.b16 %v428
          %v541 = vunpack.c.l.b16 %v429
          %v542 = vunpack.c.l.b16 %v430
          %v543 = vunpack.c.l.b16 %v431
          %v544 = vunpack.c.l.b16 %v432
          %v545 = vunpack.c.l.b16 %v433
          %v546 = vunpack.c.l.b16 %v434
          %v547 = vunpack.c.l.b16 %v435
          %v548 = vunpack.c.l.b16 %v436
          %v549 = vunpack.c.l.b16 %v437
          %v550 = vunpack.c.l.b16 %v438
          %v551 = vunpack.c.l.b16 %v439
          %v552 = vunpack.c.l.b16 %v440
          %v553 = vunpack.c.l.b16 %v441
          %v554 = vunpack.c.l.b16 %v442
          %v555 = vunpack.c.l.b16 %v443
          %v556 = vunpack.c.l.b16 %v444
          %v557 = vunpack.c.l.b16 %v445
          %v558 = vunpack.c.l.b16 %v446
          %v559 = vunpack.c.l.b16 %v447
          %v560 = vunpack.c.l.b16 %v448
          %v561 = vunpack.c.l.b16 %v449
          %v562 = vunpack.c.l.b16 %v450
          %v563 = vunpack.c.l.b16 %v451
          %v564 = vunpack.c.l.b16 %v452
          %v565 = vunpack.c.l.b16 %v453
          %v566 = vunpack.c.l.b16 %v454
          %v567 = vunpack.c.l.b16 %v455
          %v568 = vunpack.c.l.b16 %v456
          %v569 = vpack.c.b16 %v517, %v516
          %v570 = vpack.c.b16 %v519, %v518
          %v571 = vpack.c.b16 %v521, %v520
          %v572 = vpack.c.b16 %v523, %v522
          %v573 = vpack.c.b16 %v525, %v524
          %v574 = vpack.c.b16 %v527, %v526
          %v575 = vpack.c.b16 %v529, %v528
          %v576 = vpack.c.b16 %v531, %v530
          %v577 = vpack.c.b16 %v533, %v532
          %v578 = vpack.c.b16 %v535, %v534
          %v579 = vpack.c.b16 %v537, %v536
          %v580 = vpack.c.b16 %v539, %v538
          %v581 = vpack.c.b16 %v541, %v540
          %v582 = vpack.c.b16 %v543, %v542
          %v583 = vpack.c.b16 %v545, %v544
          %v584 = vpack.c.b16 %v547, %v546
          %v585 = vpack.c.b16 %v549, %v548
          %v586 = vpack.c.b16 %v551, %v550
          %v587 = vpack.c.b16 %v553, %v552
          %v588 = vpack.c.b16 %v555, %v554
          %v589 = vpack.c.b16 %v557, %v556
          %v590 = vpack.c.b16 %v559, %v558
          %v591 = vpack.c.b16 %v561, %v560
          %v592 = vpack.c.b16 %v563, %v562
          %v593 = vpack.c.b16 %v565, %v564
          %v594 = vpack.c.b16 %v567, %v566
          %v595 = vpack.c.b16 %v568, %v568
          %v597 = vsel %vm346, %v569, 0
          %v600 = vsel %vm346, %v570, 0
          %v603 = vsel %vm346, %v571, 0
          %v606 = vsel %vm346, %v572, 0
          %v609 = vsel %vm346, %v573, 0
          %v612 = vsel %vm346, %v574, 0
          %v615 = vsel %vm346, %v575, 0
          %v618 = vsel %vm346, %v576, 0
          %v621 = vsel %vm346, %v577, 0
          %v624 = vsel %vm346, %v578, 0
          %v627 = vsel %vm346, %v579, 0
          %v630 = vsel %vm346, %v580, 0
          %v633 = vsel %vm346, %v581, 0
          %v636 = vsel %vm346, %v582, 0
          %v639 = vsel %vm346, %v583, 0
          %v642 = vsel %vm346, %v584, 0
          %v645 = vsel %vm346, %v585, 0
          %v648 = vsel %vm346, %v586, 0
          %v651 = vsel %vm346, %v587, 0
          %v654 = vsel %vm346, %v588, 0
          %v657 = vsel %vm346, %v589, 0
          %v660 = vsel %vm346, %v590, 0
          %v663 = vsel %vm346, %v591, 0
          %v666 = vsel %vm346, %v592, 0
          %v669 = vsel %vm346, %v593, 0
          %v672 = vsel %vm346, %v594, 0
          %v675 = vsel %vm346, %v595, 0
          %677 = vmatprep.subr.bf16.mxu0 %v462
          %678 = vmatpush1.bf16.msra.mxu0 %v461
          %679 = vmatprep.subr.bf16.mxu0 0
          %680 = vmatpush1.bf16.msra.mxu0 0
          %681 = vmatprep.subr.bf16.mxu0 0
          %682 = vmatpush1.bf16.msra.mxu0 0
          %683 = vmatprep.subr.bf16.mxu0 0
          %684 = vmatpush1.bf16.msra.mxu0 0
          %685 = vmatprep.subr.bf16.mxu0 0
          %686 = vmatpush1.bf16.msra.mxu0 0
          %687 = vmatprep.subr.bf16.mxu0 0
          %688 = vmatpush1.bf16.msra.mxu0 0
          %689 = vmatprep.subr.bf16.mxu0 0
          %690 = vmatpush1.bf16.msra.mxu0 0
          %691 = vmatprep.subr.bf16.mxu0 0
          %692 = vmatpush1.bf16.msra.mxu0 0
          %693 = vmatprep.subr.bf16.mxu0 0
          %694 = vmatpush1.bf16.msra.mxu0 0
          %695 = vmatprep.subr.bf16.mxu0 0
          %696 = vmatpush1.bf16.msra.mxu0 0
          %697 = vmatprep.subr.bf16.mxu0 0
          %698 = vmatpush1.bf16.msra.mxu0 0
          %699 = vmatprep.subr.bf16.mxu0 0
          %700 = vmatpush1.bf16.msra.mxu0 0
          %701 = vmatprep.subr.bf16.mxu0 0
          %702 = vmatpush1.bf16.msra.mxu0 0
          %703 = vmatprep.subr.bf16.mxu0 0
          %704 = vmatpush1.bf16.msra.mxu0 0
          %705 = vmatprep.subr.bf16.mxu0 0
          %706 = vmatpush1.bf16.msra.mxu0 0
          %707 = vmatprep.subr.bf16.mxu0 0
          %708 = vmatpush1.bf16.msra.mxu0 0
          %709 = vmatprep.mubr.bf16.mxu0 0
          %710 = vmatmul.mubr.bf16.gmra.mrb[0].mxu0 %v597
          %v711 = vpop.f32.mrb[0].mxu0
          %v712 = vadd.f32 0.0, %v711
          %v713 = vpop.f32.mrb[0].mxu0
          %v714 = vadd.f32 0.0, %v713
          %v715 = vpop.f32.mrb[0].mxu0
          %v716 = vadd.f32 0.0, %v715
          %v717 = vpop.f32.mrb[0].mxu0
          %v718 = vadd.f32 0.0, %v717
          %719 = vmatprep.mubr.bf16.mxu0 0
          %720 = vmatmul.mubr.bf16.gmra.mrb[0].mxu0 %v600
          %v721 = vpop.f32.mrb[0].mxu0
          %v722 = vadd.f32 0.0, %v721
          %v723 = vpop.f32.mrb[0].mxu0
          %v724 = vadd.f32 0.0, %v723
          %v725 = vpop.f32.mrb[0].mxu0
          %v726 = vadd.f32 0.0, %v725
          %v727 = vpop.f32.mrb[0].mxu0
          %v728 = vadd.f32 0.0, %v727
          %729 = vmatprep.mubr.bf16.mxu0 0
          %730 = vmatmul.mubr.bf16.gmra.mrb[0].mxu0 %v603
          %v731 = vpop.f32.mrb[0].mxu0
          %v732 = vadd.f32 0.0, %v731
          %v733 = vpop.f32.mrb[0].mxu0
          %v734 = vadd.f32 0.0, %v733
          %v735 = vpop.f32.mrb[0].mxu0
          %v736 = vadd.f32 0.0, %v735
          %v737 = vpop.f32.mrb[0].mxu0
          %v738 = vadd.f32 0.0, %v737
          %739 = vmatprep.mubr.bf16.mxu0 0
          %740 = vmatmul.mubr.bf16.gmra.mrb[0].mxu0 %v606
          %v741 = vpop.f32.mrb[0].mxu0
          %v742 = vadd.f32 0.0, %v741
          %v743 = vpop.f32.mrb[0].mxu0
          %v744 = vadd.f32 0.0, %v743
          %v745 = vpop.f32.mrb[0].mxu0
          %v746 = vadd.f32 0.0, %v745
          %v747 = vpop.f32.mrb[0].mxu0
          %v748 = vadd.f32 0.0, %v747
          %749 = vmatprep.mubr.bf16.mxu0 0
          %750 = vmatmul.mubr.bf16.gmra.mrb[0].mxu0 %v609
          %v751 = vpop.f32.mrb[0].mxu0
          %v752 = vadd.f32 0.0, %v751
          %v753 = vpop.f32.mrb[0].mxu0
          %v754 = vadd.f32 0.0, %v753
          %v755 = vpop.f32.mrb[0].mxu0
          %v756 = vadd.f32 0.0, %v755
          %v757 = vpop.f32.mrb[0].mxu0
          %v758 = vadd.f32 0.0, %v757
          %759 = vmatprep.mubr.bf16.mxu0 0
          %760 = vmatmul.mubr.bf16.gmra.mrb[0].mxu0 %v612
          %v761 = vpop.f32.mrb[0].mxu0
          %v762 = vadd.f32 0.0, %v761
          %v763 = vpop.f32.mrb[0].mxu0
          %v764 = vadd.f32 0.0, %v763
          %v765 = vpop.f32.mrb[0].mxu0
          %v766 = vadd.f32 0.0, %v765
          %v767 = vpop.f32.mrb[0].mxu0
          %v768 = vadd.f32 0.0, %v767
          %769 = vmatprep.mubr.bf16.mxu0 0
          %770 = vmatmul.mubr.bf16.gmra.mrb[0].mxu0 %v615
          %v771 = vpop.f32.mrb[0].mxu0
          %v772 = vadd.f32 0.0, %v771
          %v773 = vpop.f32.mrb[0].mxu0
          %v774 = vadd.f32 0.0, %v773
          %v775 = vpop.f32.mrb[0].mxu0
          %v776 = vadd.f32 0.0, %v775
          %v777 = vpop.f32.mrb[0].mxu0
          %v778 = vadd.f32 0.0, %v777
          %779 = vmatprep.mubr.bf16.mxu0 0
          %780 = vmatmul.mubr.bf16.gmra.mrb[0].mxu0 %v618
          %v781 = vpop.f32.mrb[0].mxu0
          %v782 = vadd.f32 0.0, %v781
          %v783 = vpop.f32.mrb[0].mxu0
          %v784 = vadd.f32 0.0, %v783
          %v785 = vpop.f32.mrb[0].mxu0
          %v786 = vadd.f32 0.0, %v785
          %v787 = vpop.f32.mrb[0].mxu0
          %v788 = vadd.f32 0.0, %v787
          %789 = vmatprep.mubr.bf16.mxu0 0
          %790 = vmatmul.mubr.bf16.gmra.mrb[0].mxu0 %v621
          %v791 = vpop.f32.mrb[0].mxu0
          %v792 = vadd.f32 0.0, %v791
          %v793 = vpop.f32.mrb[0].mxu0
          %v794 = vadd.f32 0.0, %v793
          %v795 = vpop.f32.mrb[0].mxu0
          %v796 = vadd.f32 0.0, %v795
          %v797 = vpop.f32.mrb[0].mxu0
          %v798 = vadd.f32 0.0, %v797
          %799 = vmatprep.mubr.bf16.mxu0 0
          %800 = vmatmul.mubr.bf16.gmra.mrb[0].mxu0 %v624
          %v801 = vpop.f32.mrb[0].mxu0
          %v802 = vadd.f32 0.0, %v801
          %v803 = vpop.f32.mrb[0].mxu0
          %v804 = vadd.f32 0.0, %v803
          %v805 = vpop.f32.mrb[0].mxu0
          %v806 = vadd.f32 0.0, %v805
          %v807 = vpop.f32.mrb[0].mxu0
          %v808 = vadd.f32 0.0, %v807
          %809 = vmatprep.mubr.bf16.mxu0 0
          %810 = vmatmul.mubr.bf16.gmra.mrb[0].mxu0 %v627
          %v811 = vpop.f32.mrb[0].mxu0
          %v812 = vadd.f32 0.0, %v811
          %v813 = vpop.f32.mrb[0].mxu0
          %v814 = vadd.f32 0.0, %v813
          %v815 = vpop.f32.mrb[0].mxu0
          %v816 = vadd.f32 0.0, %v815
          %v817 = vpop.f32.mrb[0].mxu0
          %v818 = vadd.f32 0.0, %v817
          %819 = vmatprep.mubr.bf16.mxu0 0
          %820 = vmatmul.mubr.bf16.gmra.mrb[0].mxu0 %v630
          %v821 = vpop.f32.mrb[0].mxu0
          %v822 = vadd.f32 0.0, %v821
          %v823 = vpop.f32.mrb[0].mxu0
          %v824 = vadd.f32 0.0, %v823
          %v825 = vpop.f32.mrb[0].mxu0
          %v826 = vadd.f32 0.0, %v825
          %v827 = vpop.f32.mrb[0].mxu0
          %v828 = vadd.f32 0.0, %v827
          %829 = vmatprep.mubr.bf16.mxu0 0
          %830 = vmatmul.mubr.bf16.gmra.mrb[0].mxu0 %v633
          %v831 = vpop.f32.mrb[0].mxu0
          %v832 = vadd.f32 0.0, %v831
          %v833 = vpop.f32.mrb[0].mxu0
          %v834 = vadd.f32 0.0, %v833
          %v835 = vpop.f32.mrb[0].mxu0
          %v836 = vadd.f32 0.0, %v835
          %v837 = vpop.f32.mrb[0].mxu0
          %v838 = vadd.f32 0.0, %v837
          %839 = vmatprep.mubr.bf16.mxu0 0
          %840 = vmatmul.mubr.bf16.gmra.mrb[0].mxu0 %v636
          %v841 = vpop.f32.mrb[0].mxu0
          %v842 = vadd.f32 0.0, %v841
          %v843 = vpop.f32.mrb[0].mxu0
          %v844 = vadd.f32 0.0, %v843
          %v845 = vpop.f32.mrb[0].mxu0
          %v846 = vadd.f32 0.0, %v845
          %v847 = vpop.f32.mrb[0].mxu0
          %v848 = vadd.f32 0.0, %v847
          %849 = vmatprep.mubr.bf16.mxu0 0
          %850 = vmatmul.mubr.bf16.gmra.mrb[0].mxu0 %v639
          %v851 = vpop.f32.mrb[0].mxu0
          %v852 = vadd.f32 0.0, %v851
          %v853 = vpop.f32.mrb[0].mxu0
          %v854 = vadd.f32 0.0, %v853
          %v855 = vpop.f32.mrb[0].mxu0
          %v856 = vadd.f32 0.0, %v855
          %v857 = vpop.f32.mrb[0].mxu0
          %v858 = vadd.f32 0.0, %v857
          %859 = vmatprep.mubr.bf16.mxu0 0
          %860 = vmatmul.mubr.bf16.gmra.mrb[0].mxu0 %v642
          %v861 = vpop.f32.mrb[0].mxu0
          %v862 = vadd.f32 0.0, %v861
          %v863 = vpop.f32.mrb[0].mxu0
          %v864 = vadd.f32 0.0, %v863
          %v865 = vpop.f32.mrb[0].mxu0
          %v866 = vadd.f32 0.0, %v865
          %v867 = vpop.f32.mrb[0].mxu0
          %v868 = vadd.f32 0.0, %v867
          %869 = vmatprep.mubr.bf16.mxu0 0
          %870 = vmatmul.mubr.bf16.gmra.mrb[0].mxu0 %v645
          %v871 = vpop.f32.mrb[0].mxu0
          %v872 = vadd.f32 0.0, %v871
          %v873 = vpop.f32.mrb[0].mxu0
          %v874 = vadd.f32 0.0, %v873
          %v875 = vpop.f32.mrb[0].mxu0
          %v876 = vadd.f32 0.0, %v875
          %v877 = vpop.f32.mrb[0].mxu0
          %v878 = vadd.f32 0.0, %v877
          %879 = vmatprep.mubr.bf16.mxu0 0
          %880 = vmatmul.mubr.bf16.gmra.mrb[0].mxu0 %v648
          %v881 = vpop.f32.mrb[0].mxu0
          %v882 = vadd.f32 0.0, %v881
          %v883 = vpop.f32.mrb[0].mxu0
          %v884 = vadd.f32 0.0, %v883
          %v885 = vpop.f32.mrb[0].mxu0
          %v886 = vadd.f32 0.0, %v885
          %v887 = vpop.f32.mrb[0].mxu0
          %v888 = vadd.f32 0.0, %v887
          %889 = vmatprep.mubr.bf16.mxu0 0
          %890 = vmatmul.mubr.bf16.gmra.mrb[0].mxu0 %v651
          %v891 = vpop.f32.mrb[0].mxu0
          %v892 = vadd.f32 0.0, %v891
          %v893 = vpop.f32.mrb[0].mxu0
          %v894 = vadd.f32 0.0, %v893
          %v895 = vpop.f32.mrb[0].mxu0
          %v896 = vadd.f32 0.0, %v895
          %v897 = vpop.f32.mrb[0].mxu0
          %v898 = vadd.f32 0.0, %v897
          %899 = vmatprep.mubr.bf16.mxu0 0
          %900 = vmatmul.mubr.bf16.gmra.mrb[0].mxu0 %v654
          %v901 = vpop.f32.mrb[0].mxu0
          %v902 = vadd.f32 0.0, %v901
          %v903 = vpop.f32.mrb[0].mxu0
          %v904 = vadd.f32 0.0, %v903
          %v905 = vpop.f32.mrb[0].mxu0
          %v906 = vadd.f32 0.0, %v905
          %v907 = vpop.f32.mrb[0].mxu0
          %v908 = vadd.f32 0.0, %v907
          %909 = vmatprep.mubr.bf16.mxu0 0
          %910 = vmatmul.mubr.bf16.gmra.mrb[0].mxu0 %v657
          %v911 = vpop.f32.mrb[0].mxu0
          %v912 = vadd.f32 0.0, %v911
          %v913 = vpop.f32.mrb[0].mxu0
          %v914 = vadd.f32 0.0, %v913
          %v915 = vpop.f32.mrb[0].mxu0
          %v916 = vadd.f32 0.0, %v915
          %v917 = vpop.f32.mrb[0].mxu0
          %v918 = vadd.f32 0.0, %v917
          %919 = vmatprep.mubr.bf16.mxu0 0
          %920 = vmatmul.mubr.bf16.gmra.mrb[0].mxu0 %v660
          %v921 = vpop.f32.mrb[0].mxu0
          %v922 = vadd.f32 0.0, %v921
          %v923 = vpop.f32.mrb[0].mxu0
          %v924 = vadd.f32 0.0, %v923
          %v925 = vpop.f32.mrb[0].mxu0
          %v926 = vadd.f32 0.0, %v925
          %v927 = vpop.f32.mrb[0].mxu0
          %v928 = vadd.f32 0.0, %v927
          %929 = vmatprep.mubr.bf16.mxu0 0
          %930 = vmatmul.mubr.bf16.gmra.mrb[0].mxu0 %v663
          %v931 = vpop.f32.mrb[0].mxu0
          %v932 = vadd.f32 0.0, %v931
          %v933 = vpop.f32.mrb[0].mxu0
          %v934 = vadd.f32 0.0, %v933
          %v935 = vpop.f32.mrb[0].mxu0
          %v936 = vadd.f32 0.0, %v935
          %v937 = vpop.f32.mrb[0].mxu0
          %v938 = vadd.f32 0.0, %v937
          %939 = vmatprep.mubr.bf16.mxu0 0
          %940 = vmatmul.mubr.bf16.gmra.mrb[0].mxu0 %v666
          %v941 = vpop.f32.mrb[0].mxu0
          %v942 = vadd.f32 0.0, %v941
          %v943 = vpop.f32.mrb[0].mxu0
          %v944 = vadd.f32 0.0, %v943
          %v945 = vpop.f32.mrb[0].mxu0
          %v946 = vadd.f32 0.0, %v945
          %v947 = vpop.f32.mrb[0].mxu0
          %v948 = vadd.f32 0.0, %v947
          %949 = vmatprep.mubr.bf16.mxu0 0
          %950 = vmatmul.mubr.bf16.gmra.mrb[0].mxu0 %v669
          %v951 = vpop.f32.mrb[0].mxu0
          %v952 = vadd.f32 0.0, %v951
          %v953 = vpop.f32.mrb[0].mxu0
          %v954 = vadd.f32 0.0, %v953
          %v955 = vpop.f32.mrb[0].mxu0
          %v956 = vadd.f32 0.0, %v955
          %v957 = vpop.f32.mrb[0].mxu0
          %v958 = vadd.f32 0.0, %v957
          %959 = vmatprep.mubr.bf16.mxu0 0
          %960 = vmatmul.mubr.bf16.gmra.mrb[0].mxu0 %v672
          %v961 = vpop.f32.mrb[0].mxu0
          %v962 = vadd.f32 0.0, %v961
          %v963 = vpop.f32.mrb[0].mxu0
          %v964 = vadd.f32 0.0, %v963
          %v965 = vpop.f32.mrb[0].mxu0
          %v966 = vadd.f32 0.0, %v965
          %v967 = vpop.f32.mrb[0].mxu0
          %v968 = vadd.f32 0.0, %v967
          %969 = vmatprep.mubr.bf16.mxu0 0
          %970 = vmatmul.mubr.bf16.gmra.mrb[0].mxu0 %v675
          %v971 = vpop.f32.mrb[0].mxu0
          %v972 = vadd.f32 0.0, %v971
          %v973 = vpop.f32.mrb[0].mxu0
          %v974 = vadd.f32 0.0, %v973
          %v975 = vpop.f32.mrb[0].mxu0
          %v976 = vpop.f32.mrb[0].mxu0
          %977 = vdwg.mxu0
          %978 = vst [vmem:[%s310] sm:$0xff] %v712
          %979 = vst [vmem:[%s310 + $0x8] sm:$0xff] %v714
          %980 = vst [vmem:[%s310 + $0x10] sm:$0xff] %v716
          %981 = vst [vmem:[%s310 + $0x18] sm:$0xff] %v718
          %982 = vst [vmem:[%s310 + $0x20] sm:$0xff] %v722
          %983 = vst [vmem:[%s310 + $0x28] sm:$0xff] %v724
          %984 = vst [vmem:[%s310 + $0x30] sm:$0xff] %v726
          %985 = vst [vmem:[%s310 + $0x38] sm:$0xff] %v728
          %986 = vst [vmem:[%s310 + $0x40] sm:$0xff] %v732
          %987 = vst [vmem:[%s310 + $0x48] sm:$0xff] %v734
          %988 = vst [vmem:[%s310 + $0x50] sm:$0xff] %v736
          %989 = vst [vmem:[%s310 + $0x58] sm:$0xff] %v738
          %990 = vst [vmem:[%s310 + $0x60] sm:$0xff] %v742
          %991 = vst [vmem:[%s310 + $0x68] sm:$0xff] %v744
          %992 = vst [vmem:[%s310 + $0x70] sm:$0xff] %v746
          %993 = vst [vmem:[%s310 + $0x78] sm:$0xff] %v748
          %994 = vst [vmem:[%s310 + $0x80] sm:$0xff] %v752
          %995 = vst [vmem:[%s310 + $0x88] sm:$0xff] %v754
          %996 = vst [vmem:[%s310 + $0x90] sm:$0xff] %v756
          %997 = vst [vmem:[%s310 + $0x98] sm:$0xff] %v758
          %998 = vst [vmem:[%s310 + $0xa0] sm:$0xff] %v762
          %999 = vst [vmem:[%s310 + $0xa8] sm:$0xff] %v764
          %1000 = vst [vmem:[%s310 + $0xb0] sm:$0xff] %v766
          %1001 = vst [vmem:[%s310 + $0xb8] sm:$0xff] %v768
          %1002 = vst [vmem:[%s310 + $0xc0] sm:$0xff] %v772
          %1003 = vst [vmem:[%s310 + $0xc8] sm:$0xff] %v774
          %1004 = vst [vmem:[%s310 + $0xd0] sm:$0xff] %v776
          %1005 = vst [vmem:[%s310 + $0xd8] sm:$0xff] %v778
          %1006 = vst [vmem:[%s310 + $0xe0] sm:$0xff] %v782
          %1007 = vst [vmem:[%s310 + $0xe8] sm:$0xff] %v784
          %1008 = vst [vmem:[%s310 + $0xf0] sm:$0xff] %v786
          %1009 = vst [vmem:[%s310 + $0xf8] sm:$0xff] %v788
          %1010 = vst [vmem:[%s310 + $0x100] sm:$0xff] %v792
          %1011 = vst [vmem:[%s310 + $0x108] sm:$0xff] %v794
          %1012 = vst [vmem:[%s310 + $0x110] sm:$0xff] %v796
          %1013 = vst [vmem:[%s310 + $0x118] sm:$0xff] %v798
          %1014 = vst [vmem:[%s310 + $0x120] sm:$0xff] %v802
          %1015 = vst [vmem:[%s310 + $0x128] sm:$0xff] %v804
          %1016 = vst [vmem:[%s310 + $0x130] sm:$0xff] %v806
          %1017 = vst [vmem:[%s310 + $0x138] sm:$0xff] %v808
          %1018 = vst [vmem:[%s310 + $0x140] sm:$0xff] %v812
          %1019 = vst [vmem:[%s310 + $0x148] sm:$0xff] %v814
          %1020 = vst [vmem:[%s310 + $0x150] sm:$0xff] %v816
          %1021 = vst [vmem:[%s310 + $0x158] sm:$0xff] %v818
          %1022 = vst [vmem:[%s310 + $0x160] sm:$0xff] %v822
          %1023 = vst [vmem:[%s310 + $0x168] sm:$0xff] %v824
          %1024 = vst [vmem:[%s310 + $0x170] sm:$0xff] %v826
          %1025 = vst [vmem:[%s310 + $0x178] sm:$0xff] %v828
          %1026 = vst [vmem:[%s310 + $0x180] sm:$0xff] %v832
          %1027 = vst [vmem:[%s310 + $0x188] sm:$0xff] %v834
          %1028 = vst [vmem:[%s310 + $0x190] sm:$0xff] %v836
          %1029 = vst [vmem:[%s310 + $0x198] sm:$0xff] %v838
          %1030 = vst [vmem:[%s310 + $0x1a0] sm:$0xff] %v842
          %1031 = vst [vmem:[%s310 + $0x1a8] sm:$0xff] %v844
          %1032 = vst [vmem:[%s310 + $0x1b0] sm:$0xff] %v846
          %1033 = vst [vmem:[%s310 + $0x1b8] sm:$0xff] %v848
          %1034 = vst [vmem:[%s310 + $0x1c0] sm:$0xff] %v852
          %1035 = vst [vmem:[%s310 + $0x1c8] sm:$0xff] %v854
          %1036 = vst [vmem:[%s310 + $0x1d0] sm:$0xff] %v856
          %1037 = vst [vmem:[%s310 + $0x1d8] sm:$0xff] %v858
          %1038 = vst [vmem:[%s310 + $0x1e0] sm:$0xff] %v862
          %1039 = vst [vmem:[%s310 + $0x1e8] sm:$0xff] %v864
          %1040 = vst [vmem:[%s310 + $0x1f0] sm:$0xff] %v866
          %1041 = vst [vmem:[%s310 + $0x1f8] sm:$0xff] %v868
          %1042 = vst [vmem:[%s310 + $0x200] sm:$0xff] %v872
          %1043 = vst [vmem:[%s310 + $0x208] sm:$0xff] %v874
          %1044 = vst [vmem:[%s310 + $0x210] sm:$0xff] %v876
          %1045 = vst [vmem:[%s310 + $0x218] sm:$0xff] %v878
          %1046 = vst [vmem:[%s310 + $0x220] sm:$0xff] %v882
          %1047 = vst [vmem:[%s310 + $0x228] sm:$0xff] %v884
          %1048 = vst [vmem:[%s310 + $0x230] sm:$0xff] %v886
          %1049 = vst [vmem:[%s310 + $0x238] sm:$0xff] %v888
          %1050 = vst [vmem:[%s310 + $0x240] sm:$0xff] %v892
          %1051 = vst [vmem:[%s310 + $0x248] sm:$0xff] %v894
          %1052 = vst [vmem:[%s310 + $0x250] sm:$0xff] %v896
          %1053 = vst [vmem:[%s310 + $0x258] sm:$0xff] %v898
          %1054 = vst [vmem:[%s310 + $0x260] sm:$0xff] %v902
          %1055 = vst [vmem:[%s310 + $0x268] sm:$0xff] %v904
          %1056 = vst [vmem:[%s310 + $0x270] sm:$0xff] %v906
          %1057 = vst [vmem:[%s310 + $0x278] sm:$0xff] %v908
          %1058 = vst [vmem:[%s310 + $0x280] sm:$0xff] %v912
          %1059 = vst [vmem:[%s310 + $0x288] sm:$0xff] %v914
          %1060 = vst [vmem:[%s310 + $0x290] sm:$0xff] %v916
          %1061 = vst [vmem:[%s310 + $0x298] sm:$0xff] %v918
          %1062 = vst [vmem:[%s310 + $0x2a0] sm:$0xff] %v922
          %1063 = vst [vmem:[%s310 + $0x2a8] sm:$0xff] %v924
          %1064 = vst [vmem:[%s310 + $0x2b0] sm:$0xff] %v926
          %1065 = vst [vmem:[%s310 + $0x2b8] sm:$0xff] %v928
          %1066 = vst [vmem:[%s310 + $0x2c0] sm:$0xff] %v932
          %1067 = vst [vmem:[%s310 + $0x2c8] sm:$0xff] %v934
          %1068 = vst [vmem:[%s310 + $0x2d0] sm:$0xff] %v936
          %1069 = vst [vmem:[%s310 + $0x2d8] sm:$0xff] %v938
          %1070 = vst [vmem:[%s310 + $0x2e0] sm:$0xff] %v942
          %1071 = vst [vmem:[%s310 + $0x2e8] sm:$0xff] %v944
          %1072 = vst [vmem:[%s310 + $0x2f0] sm:$0xff] %v946
          %1073 = vst [vmem:[%s310 + $0x2f8] sm:$0xff] %v948
          %1074 = vst [vmem:[%s310 + $0x300] sm:$0xff] %v952
          %1075 = vst [vmem:[%s310 + $0x308] sm:$0xff] %v954
          %1076 = vst [vmem:[%s310 + $0x310] sm:$0xff] %v956
          %1077 = vst [vmem:[%s310 + $0x318] sm:$0xff] %v958
          %1078 = vst [vmem:[%s310 + $0x320] sm:$0xff] %v962
          %1079 = vst [vmem:[%s310 + $0x328] sm:$0xff] %v964
          %1080 = vst [vmem:[%s310 + $0x330] sm:$0xff] %v966
          %1081 = vst [vmem:[%s310 + $0x338] sm:$0xff] %v968
          %1082 = vst [vmem:[%s310 + $0x340] sm:$0xff] %v972
          %1083 = vst [vmem:[%s310 + $0x348] sm:$0xff] %v974
        $region60: #{tpu_custom_call.1} parent=35 // pred_fallthru
          _
        %s1084 = sand.u32 %s152, 1
        %s1085 = scalar_lea.sflag [#allocation5], %s1084
        %s1086 = sand.u32 %s152, 1
        %s1087 = smul.addr %s1086, 848
        %s1088 = scalar_lea.vmem [#allocation11], %s1087
        // Predicated region
        $region61: #{tpu_custom_call.1} parent=35 // pred_check
          %p1089 = pneg %p162
        $region62: #{tpu_custom_call.1} parent=35 // pred_check_branch
          %1091 = sbr.rel (%p1089) target = $region64
        $region63: #{tpu_custom_call.1} parent=35 // pred_region
          %s1092 = smul.u32 2, %s31
          %s1094 = ssub.s32 13568, 13568
          %1095 = vsyncadd %s1085, %s1094
          %s1096 = smul.addr %s30, 212
          %s1097 = sadd.s32 %s1092, %s1096
          %s1098 = smul.addr %s1097, 128
          %s1099 = scalar_lea.hbm %s4, %s1098
          %s1100 = sshll.u32 %s1088, 4
          %s1101 = int_to_ptr.vmem [resolvable:$true] %s1100
          %1106 = dma.vmem_to_hbm [thread:$0]  %s1101, 13568, %s1099, %s1085, 256, 512, 16
        $region64: #{tpu_custom_call.1} parent=35 // pred_fallthru
          _
      $region36: #{tpu_custom_call.1} parent=5 // pred_fallthru
        _
      %p1107 = scmp.le.s32.totalorder 2, %s20
      // Predicated region
      $region65: #{tpu_custom_call.1} parent=5 // pred_check
        %p1108 = pneg %p1107
      $region66: #{tpu_custom_call.1} parent=5 // pred_check_branch
        %1110 = sbr.rel (%p1108) target = $region68
      $region67: #{tpu_custom_call.1} parent=5 // pred_region
        %s1111 = ssub.s32 %s20, 2
        // Predicated region
        $region69: #{tpu_custom_call.1} parent=67 // pred_check
          %p1112 = pneg %p168
        $region70: #{tpu_custom_call.1} parent=67 // pred_check_branch
          %1114 = sbr.rel (%p1112) target = $region72
        $region71: #{tpu_custom_call.1} parent=67 // pred_region
          %s1115 = sand.u32 %s153, 1
          %s1116 = scalar_lea.sflag [#allocation5], %s1115
          %s1117 = sand.u32 %s153, 1
          %s1118 = smul.addr %s1117, 848
          %s1119 = scalar_lea.vmem [#allocation11], %s1118
          %1120 = dma.done %s1116, 13568
        $region72: #{tpu_custom_call.1} parent=67 // pred_fallthru
          _
      $region68: #{tpu_custom_call.1} parent=5 // pred_fallthru
        _
    $region6: #{tpu_custom_call.1} parent=1 // loop_footer
      %s24 = sadd.s32 1, %s20
    $region7: #{tpu_custom_call.1} parent=1 // loop_footer_branch
      %19 = sbr.rel target = $region3
    $region8: #{tpu_custom_call.1} parent=1 // loop_exit
      _
    %1121 = vsyncpa [#allocation4], 1
    %s1122 = scalar_lea.sflag [#allocation4], 1
    %1123 = vsyncpa %s1122, 1
    %1124 = vsyncpa [#allocation9], 1
    %s1125 = scalar_lea.sflag [#allocation9], 1
    %1126 = vsyncpa %s1125, 1
    %1127 = vsyncpa [#allocation5], 1
    %s1128 = scalar_lea.sflag [#allocation5], 1
    %1129 = vsyncpa %s1128, 1
    %1130 = vsyncpa [#allocation6], 1
    %s1131 = scalar_lea.sflag [#allocation6], 1
    %1132 = vsyncpa %s1131, 1

</llo_original>
